<compile_context>
chip_gen: v7x
topology: tpu7x:2x2x1
jax: 0.10.0
libtpu: 0.0.40
codegen_flags: <defaults>
</compile_context>

<pallas_src>
import math

import jax
import jax.numpy as jnp
from jax.experimental import pallas as pl
from jax.experimental.pallas import tpu as pltpu


def _fusion_conv1d_kernel(w_ref, b_ref, x_ref, o_ref):
    # w_ref: (C_out, C_in)  compute dtype (resident across the grid)
    # b_ref: (C_out, 1)     f32           (resident across the grid)
    # x_ref: (1, C_in, TL)  compute dtype
    # o_ref: (1, C_out, TL) output dtype
    y = jnp.dot(w_ref[...], x_ref[0], preferred_element_type=jnp.float32)
    y = y + b_ref[...]                       # broadcast bias over L
    o_ref[0] = y.astype(o_ref.dtype)


def _ceil_div(a, b):
    return -(-a // b)


def _vmem_capacity_bytes():
    try:
        return int(pltpu.get_tpu_info().vmem_capacity_bytes)
    except Exception:
        return 64 << 20  # conservative fallback: v7x per-TensorCore VMEM


def _pick_tiling(L, c_in, c_out, in_isz, out_isz, tile_cap=4096):
    """Pick (tile_l, num_l_tiles): tile_l is a multiple of 256, sized to VMEM."""
    budget = _vmem_capacity_bytes() // 3  # headroom: weights, compiler scratch
    per_col = 2 * (c_in * in_isz + c_out * out_isz)  # double-buffered x + out
    cap = (budget // per_col) // 256 * 256
    cap = max(256, min(tile_cap, cap))
    num_l = _ceil_div(L, cap)
    # Balance tiles evenly (minimizes padding) while staying <= cap.
    tile_l = _ceil_div(_ceil_div(L, num_l), 256) * 256
    return int(tile_l), int(num_l)


def history_feature_fusion_conv1d_cav(bev1, bev2, weight, bias, *,
                                      tile_l=None,
                                      compute_dtype=jnp.bfloat16):
    """bev1, bev2: (B, 1, H, W, C); weight: (C_out, 2C); bias: (C_out,)."""
    B, one, H, W, C = bev1.shape
    assert one == 1 and bev2.shape == bev1.shape
    C_in = 2 * C
    C_out = weight.shape[0]
    assert weight.shape == (C_out, C_in)
    L = H * W

    out_dtype = bev1.dtype
    if compute_dtype is None:
        compute_dtype = out_dtype
    in_isz = jnp.dtype(compute_dtype).itemsize
    out_isz = jnp.dtype(out_dtype).itemsize

    # Cast before the concat so the (unavoidable) materialized fused
    # intermediate is half-size in the bf16 path.
    fused = jnp.concatenate(
        [bev1.astype(compute_dtype), bev2.astype(compute_dtype)], axis=4)
    # Flat reinterpretation identical to torch .view(-1, 2C, H*W) on
    # contiguous data (pure metadata change for row-major layout).
    x = fused.reshape(B, C_in, L)

    if tile_l is None:
        tl, num_l = _pick_tiling(L, C_in, C_out, in_isz, out_isz)
    else:
        tl = _ceil_div(int(tile_l), 128) * 128   # keep lane-aligned
        num_l = _ceil_div(L, tl)
    Lp = num_l * tl
    if Lp != L:
        # Pad along L so production L=25200 (not a multiple of 128) runs with
        # large aligned tiles; padded columns are sliced off the output.
        x = jnp.pad(x, ((0, 0), (0, 0), (0, Lp - L)))

    w = weight.astype(compute_dtype)
    bias2d = bias.astype(jnp.float32).reshape(C_out, 1)

    # Explicit VMEM budget so large tiles work on v5e's 16 MiB default scoped
    # limit without exceeding v7x's 64 MiB physical VMEM.
    vmem_needed = (2 * C_in * tl * in_isz        # x tile, double-buffered
                   + 2 * C_out * tl * out_isz    # out tile, double-buffered
                   + 2 * C_out * C_in * in_isz   # weight buffers (resident)
                   + 2 * C_out * 4               # bias
                   + (4 << 20))                  # headroom
    vmem_limit = int(min(max(vmem_needed, 16 << 20), 96 << 20))

    cost = pl.CostEstimate(
        flops=2 * B * C_out * C_in * Lp,
        transcendentals=0,
        bytes_accessed=(B * C_in * Lp * in_isz + B * C_out * Lp * out_isz
                        + C_out * C_in * in_isz + C_out * 4))

    y = pl.pallas_call(
        _fusion_conv1d_kernel,
        out_shape=jax.ShapeDtypeStruct((B, C_out, Lp), out_dtype),
        grid_spec=pltpu.PrefetchScalarGridSpec(
            num_scalar_prefetch=0,
            # L-tile axis first so the megacore split (v7x) lands on the
            # large axis even when B is tiny/odd.
            grid=(num_l, B),
            in_specs=[
                pl.BlockSpec((C_out, C_in), lambda l, b: (0, 0)),     # weight
                pl.BlockSpec((C_out, 1), lambda l, b: (0, 0)),        # bias
                pl.BlockSpec((1, C_in, tl), lambda l, b: (b, 0, l)),  # x tile
            ],
            out_specs=pl.BlockSpec((1, C_out, tl), lambda l, b: (b, 0, l)),
        ),
        compiler_params=pltpu.CompilerParams(
            dimension_semantics=("parallel", "parallel"),
            vmem_limit_bytes=vmem_limit),
        cost_estimate=cost,
    )(w, bias2d, x)

    if Lp != L:
        y = y[:, :, :L]
    # Final flat reshape, identical to torch .view(-1, 1, H, W, C_out).
    return y.reshape(B, 1, H, W, C_out)


if __name__ == "__main__":
    # Small shapes consistent with the module (module hardcodes H=100, W=252,
    # C=256 / C_in=512 / C_out=256; here scaled down, keeping C_out == C).
    B, H, W, C = 2, 8, 16, 128
    C_in, C_out = 2 * C, C

    key = jax.random.PRNGKey(0)
    k1, k2, kw, kb = jax.random.split(key, 4)
    bev1 = jax.random.normal(k1, (B, 1, H, W, C), dtype=jnp.float32)
    bev2 = jax.random.normal(k2, (B, 1, H, W, C), dtype=jnp.float32)

    # Deterministic params mimicking nn.Conv1d default init U(-1/sqrt(fan_in), ..).
    bound = 1.0 / (C_in ** 0.5)
    weight = jax.random.uniform(kw, (C_out, C_in), jnp.float32, -bound, bound)
    bias = jax.random.uniform(kb, (C_out,), jnp.float32, -bound, bound)

    # Pure-JAX f32 reference of the exact PyTorch semantics.
    x_ref = jnp.concatenate([bev1, bev2], axis=4).reshape(B, C_in, H * W)
    ref = (jnp.einsum("oc,bcl->bol", weight, x_ref,
                      precision=jax.lax.Precision.HIGHEST)
           + bias[None, :, None]).reshape(B, 1, H, W, C_out)

    # Default fast path: bf16 inputs/weight, f32 accumulation.
    out_bf16 = history_feature_fusion_conv1d_cav(bev1, bev2, weight, bias)
    out_bf16 = jax.block_until_ready(out_bf16)
    assert out_bf16.shape == (B, 1, H, W, C_out)
    assert out_bf16.dtype == jnp.float32
    assert jnp.allclose(out_bf16, ref, atol=3e-2, rtol=3e-2)

    # f32 compute path (numerics closest to the PyTorch reference).
    out_f32 = history_feature_fusion_conv1d_cav(
        bev1, bev2, weight, bias, compute_dtype=jnp.float32)
    out_f32 = jax.block_until_ready(out_f32)
    assert jnp.allclose(out_f32, ref, atol=1e-3, rtol=1e-3)

    print("KERNEL_OK")
</pallas_src>

<mosaic_0001>
module attributes {stable_mosaic.version = 11 : i64} {
  func.func @_fusion_conv1d_kernel(%arg0: i32, %arg1: i32, %arg2: memref<128x256xbf16, #tpu.memory_space<vmem>>, %arg3: memref<128x1xf32, #tpu.memory_space<vmem>>, %arg4: memref<1x256x256xbf16, #tpu.memory_space<vmem>>, %arg5: memref<1x128x256xf32, #tpu.memory_space<vmem>>) attributes {dimension_semantics = [#tpu.dimension_semantics<parallel>, #tpu.dimension_semantics<parallel>], iteration_bounds = array<i64: 1, 2>, scalar_prefetch = 0 : i64, scratch_operands = 0 : i64, tpu.core_type = #tpu.core_type<tc>, window_params = [{pipeline_mode = #tpu.pipeline_mode<synchronous>, transform_indices = @transform_0, window_bounds = array<i64: 128, 256>}, {pipeline_mode = #tpu.pipeline_mode<synchronous>, transform_indices = @transform_1, window_bounds = array<i64: 128, 1>}, {transform_indices = @transform_2, window_bounds = array<i64: 1, 256, 256>}, {transform_indices = @transform_3, window_bounds = array<i64: 1, 128, 256>}]} {
    %c0 = arith.constant 0 : index
    %c0_0 = arith.constant 0 : index
    %0 = vector.load %arg2[%c0, %c0_0] : memref<128x256xbf16, #tpu.memory_space<vmem>>, vector<128x256xbf16>
    %c0_1 = arith.constant 0 : index
    %c0_2 = arith.constant 0 : index
    %c0_3 = arith.constant 0 : index
    %1 = vector.load %arg4[%c0_1, %c0_2, %c0_3] : memref<1x256x256xbf16, #tpu.memory_space<vmem>>, vector<1x256x256xbf16>
    %2 = vector.shape_cast %1 : vector<1x256x256xbf16> to vector<256x256xbf16>
    %cst = arith.constant dense<0.000000e+00> : vector<128x256xf32>
    %3 = tpu.matmul %0, %2, %cst {dimension_numbers = #tpu.dot_dimension_numbers<[1], [0], [0], [1], [0, 0, 1, 1], [], []>} : vector<128x256xbf16>, vector<256x256xbf16>, vector<128x256xf32> -> vector<128x256xf32>
    %c0_4 = arith.constant 0 : index
    %c0_5 = arith.constant 0 : index
    %4 = vector.load %arg3[%c0_4, %c0_5] : memref<128x1xf32, #tpu.memory_space<vmem>>, vector<128x1xf32>
    %5 = vector.broadcast %4 : vector<128x1xf32> to vector<128x256xf32>
    %6 = arith.addf %3, %5 : vector<128x256xf32>
    %c0_6 = arith.constant 0 : index
    %c0_7 = arith.constant 0 : index
    %c0_8 = arith.constant 0 : index
    %7 = vector.load %arg5[%c0_6, %c0_7, %c0_8] : memref<1x128x256xf32, #tpu.memory_space<vmem>>, vector<1x128x256xf32>
    %8 = vector.shape_cast %7 : vector<1x128x256xf32> to vector<128x256xf32>
    %9 = vector.shape_cast %6 : vector<128x256xf32> to vector<1x128x256xf32>
    tpu.vector_store %arg5[%c0_6, %c0_7, %c0_8], %9 {strides = array<i32>} : memref<1x128x256xf32, #tpu.memory_space<vmem>>, vector<1x128x256xf32>,
    return
  }
  func.func @transform_0(%arg0: i32, %arg1: i32) -> (i32, i32) {
    %c0_i32 = arith.constant 0 : i32
    %c0_i32_0 = arith.constant 0 : i32
    %c0_i32_1 = arith.constant 0 : i32
    return %c0_i32, %c0_i32_0 : i32, i32
  }
  func.func @transform_1(%arg0: i32, %arg1: i32) -> (i32, i32) {
    %c0_i32 = arith.constant 0 : i32
    %c0_i32_0 = arith.constant 0 : i32
    %c0_i32_1 = arith.constant 0 : i32
    return %c0_i32, %c0_i32_0 : i32, i32
  }
  func.func @transform_2(%arg0: i32, %arg1: i32) -> (i32, i32, i32) {
    %c0_i32 = arith.constant 0 : i32
    %c0_i32_0 = arith.constant 0 : i32
    return %arg1, %c0_i32, %arg0 : i32, i32, i32
  }
  func.func @transform_3(%arg0: i32, %arg1: i32) -> (i32, i32, i32) {
    %c0_i32 = arith.constant 0 : i32
    %c0_i32_0 = arith.constant 0 : i32
    return %arg1, %c0_i32, %arg0 : i32, i32, i32
  }
}

</mosaic_0001>

<llo_original>
// kernel: tpu_custom_call.1
$region0: #{tpu_custom_call.1}
  #allocation0 [shape = 'u32[]', space=smem, size = 0x4, offset = 0x4, fixed_abs, tag = 'smem constant byte address 0x4 - core index']
  #allocation1 [shape = 'u32[144,128]{1,0:T(1,128)}', space=vmem, size = 0x12000, scoped, tag = 'internal scratch']
  %s0 = inlined_call_operand.vmem [shape: bf16[128,256], index: 0, kind: input, shape index: {}]
  %s1 = inlined_call_operand.vmem [shape: f32[128,1], index: 1, kind: input, shape index: {}]
  %s2 = inlined_call_operand.hbm [shape: bf16[2,256,256], index: 2, kind: input, shape index: {}]
  %s3 = inlined_call_operand.hbm [shape: f32[2,128,256], index: 3, kind: output, shape index: {}]
  %s4 = sld [smem:[#allocation0]]
  $region49: #{tpu_custom_call.1} parent=0
    _
  %s6 = ssub.s32 1, %s4
  %s7 = scalar_select 0, %s6, %s4
  $region1: #{tpu_custom_call.1} parent=0
    #allocation2 [shape = 'u8[262144]{0}', space=vmem, size = 0x40000, scoped, tag = 'input window, operand 2']
    #allocation3 [shape = 's32[2]{0}', space=sflag, size = 0x8, scoped, tag = 'scoped memory for tpu_custom_call.1']
    #allocation4 [shape = 's32[2]{0}', space=sflag, size = 0x8, scoped, tag = 'scoped memory for tpu_custom_call.1']
    #allocation5 [shape = 'u8[262144]{0}', space=vmem, size = 0x40000, scoped, tag = 'output window, operand 0']
    %8 = vsyncpa [#allocation3], 0
    %s9 = scalar_lea.sflag [#allocation3], 1
    %10 = vsyncpa %s9, 0
    %11 = vsyncpa [#allocation4], 0
    %s12 = scalar_lea.sflag [#allocation4], 1
    %13 = vsyncpa %s12, 0
    loop: start=0, step=1, limit=4
    $region2: #{tpu_custom_call.1} parent=1 // loop_pre_header
      _
    $region3: #{tpu_custom_call.1} parent=1 // loop_header
      %s15 = sphi 0, %s19
      %p16 = scmp.ge.s32.totalorder %s15, 4
      %s22 = sphi 0, %s34
      %s23 = sphi 0, %s30
      %s24 = sphi 0, %s22
      %s25 = sphi 0, %s23
      %s26 = sphi 0, %s24
      %s27 = sphi 0, %s25
      %s35 = sphi 0, %s35
      %s37 = sphi 0, %s35
      %s38 = sphi 0, %s37
      %s52 = sphi 0, %s38
      %s56 = sphi 0, %s56
      %s58 = sphi 0, %s56
      %s59 = sphi 0, %s58
      %s73 = sphi 0, %s59
      %s81 = sphi 0, %s83
      %s84 = sphi 0, %s81
      %s85 = sphi 0, %s84
      %s101 = sphi 0, %s85
      %s109 = sphi 0, %s111
      %s112 = sphi 0, %s109
      %s113 = sphi 0, %s112
      %s129 = sphi 0, %s113
    $region4: #{tpu_custom_call.1} parent=1 // loop_header_branch
      %18 = sbr.rel (%p16) target = $region8
    $region5: #{tpu_custom_call.1} parent=1 // loop_body
      %s20 = ssub.s32 %s15, 1
      %s21 = ssub.s32 %s15, 2
      %s28 = sadd.s32 1, %s23
      %p29 = scmp.ge.s32.totalorder %s28, 2
      %s30 = scalar_select %p29, 0, %s28
      %s31 = sadd.s32 1, %s22
      %s32 = scalar_select %p29, %s31, %s22
      %p33 = scmp.ge.s32.totalorder %s32, 1
      %s34 = scalar_select %p33, 0, %s32
      %s36 = sadd.s32 %s35, 1
      %p39 = scmp.eq.s32.totalorder %s15, 1
      %p40 = scmp.ne.s32.totalorder %s35, %s37
      %p41 = scmp.eq.s32.totalorder %s15, 0
      %p42 = por %p40, %p41
      %p43 = scmp.ne.s32.totalorder %s35, %s37
      %p44 = scmp.eq.s32.totalorder %s20, 1
      %p45 = por %p43, %p44
      %p46 = scmp.ne.s32.totalorder %s37, %s38
      %p47 = scmp.eq.s32.totalorder %s20, 0
      %p48 = por %p46, %p47
      %p49 = scmp.ne.s32.totalorder %s37, %s38
      %p50 = scmp.eq.s32.totalorder %s21, 1
      %p51 = por %p49, %p50
      %p53 = scmp.ne.s32.totalorder %s38, %s52
      %p54 = scmp.eq.s32.totalorder %s21, 0
      %p55 = por %p53, %p54
      %s57 = sadd.s32 %s56, 1
      %p60 = scmp.eq.s32.totalorder %s15, 1
      %p61 = scmp.ne.s32.totalorder %s56, %s58
      %p62 = scmp.eq.s32.totalorder %s15, 0
      %p63 = por %p61, %p62
      %p64 = scmp.ne.s32.totalorder %s56, %s58
      %p65 = scmp.eq.s32.totalorder %s20, 1
      %p66 = por %p64, %p65
      %p67 = scmp.ne.s32.totalorder %s58, %s59
      %p68 = scmp.eq.s32.totalorder %s20, 0
      %p69 = por %p67, %p68
      %p70 = scmp.ne.s32.totalorder %s58, %s59
      %p71 = scmp.eq.s32.totalorder %s21, 1
      %p72 = por %p70, %p71
      %p74 = scmp.ne.s32.totalorder %s59, %s73
      %p75 = scmp.eq.s32.totalorder %s21, 0
      %p76 = por %p74, %p75
      %s77 = ssub.s32 %s23, %s30
      %s78 = ssub.s32 %s22, %s34
      %s79 = sor.u32 %s77, %s78
      %p80 = scmp.eq.s32.totalorder %s79, 0
      %s82 = sadd.s32 %s81, 1
      %s83 = scalar_select %p80, %s81, %s82
      %p86 = pneg %p80
      %p87 = scmp.eq.s32.totalorder %s15, 1
      %p88 = por %p86, %p87
      %p89 = scmp.ne.s32.totalorder %s81, %s84
      %p90 = scmp.eq.s32.totalorder %s15, 0
      %p91 = por %p89, %p90
      %p92 = scmp.ne.s32.totalorder %s81, %s84
      %p93 = scmp.eq.s32.totalorder %s20, 1
      %p94 = por %p92, %p93
      %p95 = scmp.ne.s32.totalorder %s84, %s85
      %p96 = scmp.eq.s32.totalorder %s20, 0
      %p97 = por %p95, %p96
      %p98 = scmp.ne.s32.totalorder %s84, %s85
      %p99 = scmp.eq.s32.totalorder %s21, 1
      %p100 = por %p98, %p99
      %p102 = scmp.ne.s32.totalorder %s85, %s101
      %p103 = scmp.eq.s32.totalorder %s21, 0
      %p104 = por %p102, %p103
      %s105 = ssub.s32 %s23, %s30
      %s106 = ssub.s32 %s22, %s34
      %s107 = sor.u32 %s105, %s106
      %p108 = scmp.eq.s32.totalorder %s107, 0
      %s110 = sadd.s32 %s109, 1
      %s111 = scalar_select %p108, %s109, %s110
      %p114 = pneg %p108
      %p115 = scmp.eq.s32.totalorder %s15, 1
      %p116 = por %p114, %p115
      %p117 = scmp.ne.s32.totalorder %s109, %s112
      %p118 = scmp.eq.s32.totalorder %s15, 0
      %p119 = por %p117, %p118
      %p120 = scmp.ne.s32.totalorder %s109, %s112
      %p121 = scmp.eq.s32.totalorder %s20, 1
      %p122 = por %p120, %p121
      %p123 = scmp.ne.s32.totalorder %s112, %s113
      %p124 = scmp.eq.s32.totalorder %s20, 0
      %p125 = por %p123, %p124
      %p126 = scmp.ne.s32.totalorder %s112, %s113
      %p127 = scmp.eq.s32.totalorder %s21, 1
      %p128 = por %p126, %p127
      %p130 = scmp.ne.s32.totalorder %s113, %s129
      %p131 = scmp.eq.s32.totalorder %s21, 0
      %p132 = por %p130, %p131
      %p133 = scmp.le.s32.totalorder 1, %s15
      %p134 = scmp.lt.s32.totalorder %s15, 3
      %p135 = pnand %p133, %p134
      %p136 = pneg %p135
      // Predicated region
      $region9: #{tpu_custom_call.1} parent=5 // pred_check
        _
      $region10: #{tpu_custom_call.1} parent=5 // pred_check_branch
        %138 = sbr.rel (%p135) target = $region12
      $region11: #{tpu_custom_call.1} parent=5 // pred_region
        %s139 = ssub.s32 %s15, 1
        // Predicated region
        $region13: #{tpu_custom_call.1} parent=11 // pred_check
          %p140 = pneg %p48
        $region14: #{tpu_custom_call.1} parent=11 // pred_check_branch
          %142 = sbr.rel (%p140) target = $region16
        $region15: #{tpu_custom_call.1} parent=11 // pred_region
          _
        $region16: #{tpu_custom_call.1} parent=11 // pred_fallthru
          _
        // Predicated region
        $region17: #{tpu_custom_call.1} parent=11 // pred_check
          %p143 = pneg %p69
        $region18: #{tpu_custom_call.1} parent=11 // pred_check_branch
          %145 = sbr.rel (%p143) target = $region20
        $region19: #{tpu_custom_call.1} parent=11 // pred_region
          _
        $region20: #{tpu_custom_call.1} parent=11 // pred_fallthru
          _
      $region12: #{tpu_custom_call.1} parent=5 // pred_fallthru
        _
      %p146 = scmp.lt.s32.totalorder %s15, 2
      // Predicated region
      $region21: #{tpu_custom_call.1} parent=5 // pred_check
        %p147 = pneg %p146
      $region22: #{tpu_custom_call.1} parent=5 // pred_check_branch
        %149 = sbr.rel (%p147) target = $region24
      $region23: #{tpu_custom_call.1} parent=5 // pred_region
        // Predicated region
        $region25: #{tpu_custom_call.1} parent=23 // pred_check
          %p150 = pneg %p91
        $region26: #{tpu_custom_call.1} parent=23 // pred_check_branch
          %152 = sbr.rel (%p150) target = $region28
        $region27: #{tpu_custom_call.1} parent=23 // pred_region
          %s153 = sand.u32 %s81, 1
          %s154 = scalar_lea.sflag [#allocation3], %s153
          %s155 = sand.u32 %s81, 1
          %s156 = smul.addr %s155, 256
          %s157 = scalar_lea.vmem [#allocation2], %s156
          %s158 = smul.u32 2, %s22
          %s160 = ssub.s32 4096, 4096
          %161 = vsyncadd %s154, %s160
          %s162 = smul.addr %s23, 64
          %s163 = sadd.s32 %s158, %s162
          %s164 = smul.addr %s163, 64
          %s165 = scalar_lea.hbm %s2, %s164
          %s166 = sshll.u32 %s157, 4
          %s167 = int_to_ptr.vmem [resolvable:$true] %s166
          %172 = dma.hbm_to_vmem [thread:$0]  %s165, 4096, %s167, %s154, 128, 128, 8
        $region28: #{tpu_custom_call.1} parent=23 // pred_fallthru
          _
      $region24: #{tpu_custom_call.1} parent=5 // pred_fallthru
        _
      %p173 = scmp.le.s32.totalorder 1, %s15
      %p174 = scmp.lt.s32.totalorder %s15, 3
      %p175 = pnand %p173, %p174
      %p176 = pneg %p175
      // Predicated region
      $region29: #{tpu_custom_call.1} parent=5 // pred_check
        _
      $region30: #{tpu_custom_call.1} parent=5 // pred_check_branch
        %178 = sbr.rel (%p175) target = $region32
      $region31: #{tpu_custom_call.1} parent=5 // pred_region
        %s179 = ssub.s32 %s15, 1
        %s180 = sand.u32 %s84, 1
        %s181 = scalar_lea.sflag [#allocation3], %s180
        %s182 = sand.u32 %s84, 1
        %s183 = smul.addr %s182, 256
        %s184 = scalar_lea.vmem [#allocation2], %s183
        // Predicated region
        $region33: #{tpu_custom_call.1} parent=31 // pred_check
          %p185 = pneg %p97
        $region34: #{tpu_custom_call.1} parent=31 // pred_check_branch
          %187 = sbr.rel (%p185) target = $region36
        $region35: #{tpu_custom_call.1} parent=31 // pred_region
          %188 = dma.done %s181, 4096
        $region36: #{tpu_custom_call.1} parent=31 // pred_fallthru
          _
        %p189 = pneg %p48
        %p190 = pneg %p45
        %p191 = pneg %p69
        %p192 = pneg %p66
        %s193 = sand.u32 %s84, 1
        %s194 = scalar_lea.sflag [#allocation3], %s193
        %s195 = sand.u32 %s84, 1
        %s196 = smul.addr %s195, 256
        %s197 = scalar_lea.vmem [#allocation2], %s196
        %p198 = pneg %p97
        %p199 = pneg %p94
        %p200 = pneg %p125
        %p201 = pneg %p122
        %s202 = sand.u32 %s112, 1
        %s203 = scalar_lea.sflag [#allocation4], %s202
        %s204 = sand.u32 %s112, 1
        %s205 = smul.addr %s204, 256
        %s206 = scalar_lea.vmem [#allocation5], %s205
        %s207 = smul.u32 2, %s24
        %s208 = smul.u32 2, %s24
        %v209 = vld [vmem:[%s0] sm:$0xff]
        %v210 = vld [vmem:[%s0 + $0x8] sm:$0xff]
        %v211 = vld [vmem:[%s0 + $0x10] sm:$0xff]
        %v212 = vld [vmem:[%s0 + $0x18] sm:$0xff]
        %v213 = vld [vmem:[%s0 + $0x20] sm:$0xff]
        %v214 = vld [vmem:[%s0 + $0x28] sm:$0xff]
        %v215 = vld [vmem:[%s0 + $0x30] sm:$0xff]
        %v216 = vld [vmem:[%s0 + $0x38] sm:$0xff]
        %v217 = vld [vmem:[%s0 + $0x40] sm:$0xff]
        %v218 = vld [vmem:[%s0 + $0x48] sm:$0xff]
        %v219 = vld [vmem:[%s0 + $0x50] sm:$0xff]
        %v220 = vld [vmem:[%s0 + $0x58] sm:$0xff]
        %v221 = vld [vmem:[%s0 + $0x60] sm:$0xff]
        %v222 = vld [vmem:[%s0 + $0x68] sm:$0xff]
        %v223 = vld [vmem:[%s0 + $0x70] sm:$0xff]
        %v224 = vld [vmem:[%s0 + $0x78] sm:$0xff]
        %v225 = vld [vmem:[%s184] sm:$0xff]
        %v226 = vld [vmem:[%s184 + $0x8] sm:$0xff]
        %v227 = vld [vmem:[%s184 + $0x10] sm:$0xff]
        %v228 = vld [vmem:[%s184 + $0x18] sm:$0xff]
        %v229 = vld [vmem:[%s184 + $0x20] sm:$0xff]
        %v230 = vld [vmem:[%s184 + $0x28] sm:$0xff]
        %v231 = vld [vmem:[%s184 + $0x30] sm:$0xff]
        %v232 = vld [vmem:[%s184 + $0x38] sm:$0xff]
        %v233 = vld [vmem:[%s184 + $0x40] sm:$0xff]
        %v234 = vld [vmem:[%s184 + $0x48] sm:$0xff]
        %v235 = vld [vmem:[%s184 + $0x50] sm:$0xff]
        %v236 = vld [vmem:[%s184 + $0x58] sm:$0xff]
        %v237 = vld [vmem:[%s184 + $0x60] sm:$0xff]
        %v238 = vld [vmem:[%s184 + $0x68] sm:$0xff]
        %v239 = vld [vmem:[%s184 + $0x70] sm:$0xff]
        %v240 = vld [vmem:[%s184 + $0x78] sm:$0xff]
        %v241 = vld [vmem:[%s184 + $0x80] sm:$0xff]
        %v242 = vld [vmem:[%s184 + $0x88] sm:$0xff]
        %v243 = vld [vmem:[%s184 + $0x90] sm:$0xff]
        %v244 = vld [vmem:[%s184 + $0x98] sm:$0xff]
        %v245 = vld [vmem:[%s184 + $0xa0] sm:$0xff]
        %v246 = vld [vmem:[%s184 + $0xa8] sm:$0xff]
        %v247 = vld [vmem:[%s184 + $0xb0] sm:$0xff]
        %v248 = vld [vmem:[%s184 + $0xb8] sm:$0xff]
        %v249 = vld [vmem:[%s184 + $0xc0] sm:$0xff]
        %v250 = vld [vmem:[%s184 + $0xc8] sm:$0xff]
        %v251 = vld [vmem:[%s184 + $0xd0] sm:$0xff]
        %v252 = vld [vmem:[%s184 + $0xd8] sm:$0xff]
        %v253 = vld [vmem:[%s184 + $0xe0] sm:$0xff]
        %v254 = vld [vmem:[%s184 + $0xe8] sm:$0xff]
        %v255 = vld [vmem:[%s184 + $0xf0] sm:$0xff]
        %v256 = vld [vmem:[%s184 + $0xf8] sm:$0xff]
        %v257 = vld [vmem:[%s1] sm:$0xff]
        %v258 = vld [vmem:[%s1 + $0x8] sm:$0xff]
        %v259 = vld [vmem:[%s1 + $0x10] sm:$0xff]
        %v260 = vld [vmem:[%s1 + $0x18] sm:$0xff]
        %v261 = vld [vmem:[%s1 + $0x20] sm:$0xff]
        %v262 = vld [vmem:[%s1 + $0x28] sm:$0xff]
        %v263 = vld [vmem:[%s1 + $0x30] sm:$0xff]
        %v264 = vld [vmem:[%s1 + $0x38] sm:$0xff]
        %v265 = vld [vmem:[%s1 + $0x40] sm:$0xff]
        %v266 = vld [vmem:[%s1 + $0x48] sm:$0xff]
        %v267 = vld [vmem:[%s1 + $0x50] sm:$0xff]
        %v268 = vld [vmem:[%s1 + $0x58] sm:$0xff]
        %v269 = vld [vmem:[%s1 + $0x60] sm:$0xff]
        %v270 = vld [vmem:[%s1 + $0x68] sm:$0xff]
        %v271 = vld [vmem:[%s1 + $0x70] sm:$0xff]
        %v272 = vld [vmem:[%s1 + $0x78] sm:$0xff]
        %274 = vset.pattern.permute.xlu0 0
        %275 = vperm.xlu0 %274, %v257
        %v276 = vpop.permute.xlu0 %275
        %279 = vset.pattern.permute.xlu0 0
        %280 = vperm.xlu0 %279, %v258
        %v281 = vpop.permute.xlu0 %280
        %284 = vset.pattern.permute.xlu0 0
        %285 = vperm.xlu0 %284, %v259
        %v286 = vpop.permute.xlu0 %285
        %289 = vset.pattern.permute.xlu0 0
        %290 = vperm.xlu0 %289, %v260
        %v291 = vpop.permute.xlu0 %290
        %294 = vset.pattern.permute.xlu0 0
        %295 = vperm.xlu0 %294, %v261
        %v296 = vpop.permute.xlu0 %295
        %299 = vset.pattern.permute.xlu0 0
        %300 = vperm.xlu0 %299, %v262
        %v301 = vpop.permute.xlu0 %300
        %304 = vset.pattern.permute.xlu0 0
        %305 = vperm.xlu0 %304, %v263
        %v306 = vpop.permute.xlu0 %305
        %309 = vset.pattern.permute.xlu0 0
        %310 = vperm.xlu0 %309, %v264
        %v311 = vpop.permute.xlu0 %310
        %314 = vset.pattern.permute.xlu0 0
        %315 = vperm.xlu0 %314, %v265
        %v316 = vpop.permute.xlu0 %315
        %319 = vset.pattern.permute.xlu0 0
        %320 = vperm.xlu0 %319, %v266
        %v321 = vpop.permute.xlu0 %320
        %324 = vset.pattern.permute.xlu0 0
        %325 = vperm.xlu0 %324, %v267
        %v326 = vpop.permute.xlu0 %325
        %329 = vset.pattern.permute.xlu0 0
        %330 = vperm.xlu0 %329, %v268
        %v331 = vpop.permute.xlu0 %330
        %334 = vset.pattern.permute.xlu0 0
        %335 = vperm.xlu0 %334, %v269
        %v336 = vpop.permute.xlu0 %335
        %339 = vset.pattern.permute.xlu0 0
        %340 = vperm.xlu0 %339, %v270
        %v341 = vpop.permute.xlu0 %340
        %344 = vset.pattern.permute.xlu0 0
        %345 = vperm.xlu0 %344, %v271
        %v346 = vpop.permute.xlu0 %345
        %349 = vset.pattern.permute.xlu0 0
        %350 = vperm.xlu0 %349, %v272
        %v351 = vpop.permute.xlu0 %350
        %v369 = vunpack.c.l.b16 %v209
        %v370 = vunpack.c.h.b16 %v209
        %v371 = vunpack.c.l.b16 %v210
        %v372 = vunpack.c.h.b16 %v210
        %v373 = vunpack.c.l.b16 %v211
        %v374 = vunpack.c.h.b16 %v211
        %v375 = vunpack.c.l.b16 %v212
        %v376 = vunpack.c.h.b16 %v212
        %v377 = vunpack.c.l.b16 %v213
        %v378 = vunpack.c.h.b16 %v213
        %v379 = vunpack.c.l.b16 %v214
        %v380 = vunpack.c.h.b16 %v214
        %v381 = vunpack.c.l.b16 %v215
        %v382 = vunpack.c.h.b16 %v215
        %v383 = vunpack.c.l.b16 %v216
        %v384 = vunpack.c.h.b16 %v216
        %v385 = vunpack.c.l.b16 %v217
        %v386 = vunpack.c.h.b16 %v217
        %v387 = vunpack.c.l.b16 %v218
        %v388 = vunpack.c.h.b16 %v218
        %v389 = vunpack.c.l.b16 %v219
        %v390 = vunpack.c.h.b16 %v219
        %v391 = vunpack.c.l.b16 %v220
        %v392 = vunpack.c.h.b16 %v220
        %v393 = vunpack.c.l.b16 %v221
        %v394 = vunpack.c.h.b16 %v221
        %v395 = vunpack.c.l.b16 %v222
        %v396 = vunpack.c.h.b16 %v222
        %v397 = vunpack.c.l.b16 %v223
        %v398 = vunpack.c.h.b16 %v223
        %v399 = vunpack.c.l.b16 %v224
        %v400 = vunpack.c.h.b16 %v224
        %v401 = vpack.c.b16 %v371, %v369
        %v402 = vpack.c.b16 %v372, %v370
        %v403 = vpack.c.b16 %v375, %v373
        %v404 = vpack.c.b16 %v376, %v374
        %v405 = vpack.c.b16 %v379, %v377
        %v406 = vpack.c.b16 %v380, %v378
        %v407 = vpack.c.b16 %v383, %v381
        %v408 = vpack.c.b16 %v384, %v382
        %v409 = vpack.c.b16 %v387, %v385
        %v410 = vpack.c.b16 %v388, %v386
        %v411 = vpack.c.b16 %v391, %v389
        %v412 = vpack.c.b16 %v392, %v390
        %v413 = vpack.c.b16 %v395, %v393
        %v414 = vpack.c.b16 %v396, %v394
        %v415 = vpack.c.b16 %v399, %v397
        %v416 = vpack.c.b16 %v400, %v398
        %v465 = vunpack.c.l.b16 %v225
        %v466 = vunpack.c.h.b16 %v225
        %v467 = vunpack.c.l.b16 %v226
        %v468 = vunpack.c.h.b16 %v226
        %v469 = vunpack.c.l.b16 %v227
        %v470 = vunpack.c.h.b16 %v227
        %v471 = vunpack.c.l.b16 %v228
        %v472 = vunpack.c.h.b16 %v228
        %v473 = vunpack.c.l.b16 %v229
        %v474 = vunpack.c.h.b16 %v229
        %v475 = vunpack.c.l.b16 %v230
        %v476 = vunpack.c.h.b16 %v230
        %v477 = vunpack.c.l.b16 %v231
        %v478 = vunpack.c.h.b16 %v231
        %v479 = vunpack.c.l.b16 %v232
        %v480 = vunpack.c.h.b16 %v232
        %v481 = vunpack.c.l.b16 %v233
        %v482 = vunpack.c.h.b16 %v233
        %v483 = vunpack.c.l.b16 %v234
        %v484 = vunpack.c.h.b16 %v234
        %v485 = vunpack.c.l.b16 %v235
        %v486 = vunpack.c.h.b16 %v235
        %v487 = vunpack.c.l.b16 %v236
        %v488 = vunpack.c.h.b16 %v236
        %v489 = vunpack.c.l.b16 %v237
        %v490 = vunpack.c.h.b16 %v237
        %v491 = vunpack.c.l.b16 %v238
        %v492 = vunpack.c.h.b16 %v238
        %v493 = vunpack.c.l.b16 %v239
        %v494 = vunpack.c.h.b16 %v239
        %v495 = vunpack.c.l.b16 %v240
        %v496 = vunpack.c.h.b16 %v240
        %v497 = vunpack.c.l.b16 %v241
        %v498 = vunpack.c.h.b16 %v241
        %v499 = vunpack.c.l.b16 %v242
        %v500 = vunpack.c.h.b16 %v242
        %v501 = vunpack.c.l.b16 %v243
        %v502 = vunpack.c.h.b16 %v243
        %v503 = vunpack.c.l.b16 %v244
        %v504 = vunpack.c.h.b16 %v244
        %v505 = vunpack.c.l.b16 %v245
        %v506 = vunpack.c.h.b16 %v245
        %v507 = vunpack.c.l.b16 %v246
        %v508 = vunpack.c.h.b16 %v246
        %v509 = vunpack.c.l.b16 %v247
        %v510 = vunpack.c.h.b16 %v247
        %v511 = vunpack.c.l.b16 %v248
        %v512 = vunpack.c.h.b16 %v248
        %v513 = vunpack.c.l.b16 %v249
        %v514 = vunpack.c.h.b16 %v249
        %v515 = vunpack.c.l.b16 %v250
        %v516 = vunpack.c.h.b16 %v250
        %v517 = vunpack.c.l.b16 %v251
        %v518 = vunpack.c.h.b16 %v251
        %v519 = vunpack.c.l.b16 %v252
        %v520 = vunpack.c.h.b16 %v252
        %v521 = vunpack.c.l.b16 %v253
        %v522 = vunpack.c.h.b16 %v253
        %v523 = vunpack.c.l.b16 %v254
        %v524 = vunpack.c.h.b16 %v254
        %v525 = vunpack.c.l.b16 %v255
        %v526 = vunpack.c.h.b16 %v255
        %v527 = vunpack.c.l.b16 %v256
        %v528 = vunpack.c.h.b16 %v256
        %v529 = vpack.c.b16 %v467, %v465
        %v530 = vpack.c.b16 %v468, %v466
        %v531 = vpack.c.b16 %v471, %v469
        %v532 = vpack.c.b16 %v472, %v470
        %v533 = vpack.c.b16 %v475, %v473
        %v534 = vpack.c.b16 %v476, %v474
        %v535 = vpack.c.b16 %v479, %v477
        %v536 = vpack.c.b16 %v480, %v478
        %v537 = vpack.c.b16 %v483, %v481
        %v538 = vpack.c.b16 %v484, %v482
        %v539 = vpack.c.b16 %v487, %v485
        %v540 = vpack.c.b16 %v488, %v486
        %v541 = vpack.c.b16 %v491, %v489
        %v542 = vpack.c.b16 %v492, %v490
        %v543 = vpack.c.b16 %v495, %v493
        %v544 = vpack.c.b16 %v496, %v494
        %v545 = vpack.c.b16 %v499, %v497
        %v546 = vpack.c.b16 %v500, %v498
        %v547 = vpack.c.b16 %v503, %v501
        %v548 = vpack.c.b16 %v504, %v502
        %v549 = vpack.c.b16 %v507, %v505
        %v550 = vpack.c.b16 %v508, %v506
        %v551 = vpack.c.b16 %v511, %v509
        %v552 = vpack.c.b16 %v512, %v510
        %v553 = vpack.c.b16 %v515, %v513
        %v554 = vpack.c.b16 %v516, %v514
        %v555 = vpack.c.b16 %v519, %v517
        %v556 = vpack.c.b16 %v520, %v518
        %v557 = vpack.c.b16 %v523, %v521
        %v558 = vpack.c.b16 %v524, %v522
        %v559 = vpack.c.b16 %v527, %v525
        %v560 = vpack.c.b16 %v528, %v526
        %593 = vmatprep.subr.bf16.mxu0 %v530
        %594 = vmatpush1.bf16.msra.mxu0 %v529
        %595 = vmatprep.subr.bf16.mxu0 %v532
        %596 = vmatpush1.bf16.msra.mxu0 %v531
        %597 = vmatprep.subr.bf16.mxu0 %v534
        %598 = vmatpush1.bf16.msra.mxu0 %v533
        %599 = vmatprep.subr.bf16.mxu0 %v536
        %600 = vmatpush1.bf16.msra.mxu0 %v535
        %601 = vmatprep.subr.bf16.mxu0 %v538
        %602 = vmatpush1.bf16.msra.mxu0 %v537
        %603 = vmatprep.subr.bf16.mxu0 %v540
        %604 = vmatpush1.bf16.msra.mxu0 %v539
        %605 = vmatprep.subr.bf16.mxu0 %v542
        %606 = vmatpush1.bf16.msra.mxu0 %v541
        %607 = vmatprep.subr.bf16.mxu0 %v544
        %608 = vmatpush1.bf16.msra.mxu0 %v543
        %609 = vmatprep.subr.bf16.mxu0 %v546
        %610 = vmatpush1.bf16.msra.mxu0 %v545
        %611 = vmatprep.subr.bf16.mxu0 %v548
        %612 = vmatpush1.bf16.msra.mxu0 %v547
        %613 = vmatprep.subr.bf16.mxu0 %v550
        %614 = vmatpush1.bf16.msra.mxu0 %v549
        %615 = vmatprep.subr.bf16.mxu0 %v552
        %616 = vmatpush1.bf16.msra.mxu0 %v551
        %617 = vmatprep.subr.bf16.mxu0 %v554
        %618 = vmatpush1.bf16.msra.mxu0 %v553
        %619 = vmatprep.subr.bf16.mxu0 %v556
        %620 = vmatpush1.bf16.msra.mxu0 %v555
        %621 = vmatprep.subr.bf16.mxu0 %v558
        %622 = vmatpush1.bf16.msra.mxu0 %v557
        %623 = vmatprep.subr.bf16.mxu0 %v560
        %624 = vmatpush1.bf16.msra.mxu0 %v559
        %625 = vmatprep.mubr.bf16.mxu0 %v402
        %626 = vmatmul.mubr.bf16.gmra.mrb[0].mxu0 %v401
        %v627 = vpop.f32.mrb[0].mxu0
        %v628 = vadd.f32 %v276, %v627
        %v629 = vpop.f32.mrb[0].mxu0
        %v630 = vadd.f32 %v276, %v629
        %v631 = vpop.f32.mrb[0].mxu0
        %v632 = vadd.f32 %v281, %v631
        %v633 = vpop.f32.mrb[0].mxu0
        %v634 = vadd.f32 %v281, %v633
        %635 = vmatprep.mubr.bf16.mxu0 %v404
        %636 = vmatmul.mubr.bf16.gmra.mrb[0].mxu0 %v403
        %v637 = vpop.f32.mrb[0].mxu0
        %v638 = vadd.f32 %v286, %v637
        %v639 = vpop.f32.mrb[0].mxu0
        %v640 = vadd.f32 %v286, %v639
        %v641 = vpop.f32.mrb[0].mxu0
        %v642 = vadd.f32 %v291, %v641
        %v643 = vpop.f32.mrb[0].mxu0
        %v644 = vadd.f32 %v291, %v643
        %645 = vmatprep.mubr.bf16.mxu0 %v406
        %646 = vmatmul.mubr.bf16.gmra.mrb[0].mxu0 %v405
        %v647 = vpop.f32.mrb[0].mxu0
        %v648 = vadd.f32 %v296, %v647
        %v649 = vpop.f32.mrb[0].mxu0
        %v650 = vadd.f32 %v296, %v649
        %v651 = vpop.f32.mrb[0].mxu0
        %v652 = vadd.f32 %v301, %v651
        %v653 = vpop.f32.mrb[0].mxu0
        %v654 = vadd.f32 %v301, %v653
        %655 = vmatprep.mubr.bf16.mxu0 %v408
        %656 = vmatmul.mubr.bf16.gmra.mrb[0].mxu0 %v407
        %v657 = vpop.f32.mrb[0].mxu0
        %v658 = vadd.f32 %v306, %v657
        %v659 = vpop.f32.mrb[0].mxu0
        %v660 = vadd.f32 %v306, %v659
        %v661 = vpop.f32.mrb[0].mxu0
        %v662 = vadd.f32 %v311, %v661
        %v663 = vpop.f32.mrb[0].mxu0
        %v664 = vadd.f32 %v311, %v663
        %665 = vmatprep.mubr.bf16.mxu0 %v410
        %666 = vmatmul.mubr.bf16.gmra.mrb[0].mxu0 %v409
        %v667 = vpop.f32.mrb[0].mxu0
        %v668 = vadd.f32 %v316, %v667
        %v669 = vpop.f32.mrb[0].mxu0
        %v670 = vadd.f32 %v316, %v669
        %v671 = vpop.f32.mrb[0].mxu0
        %v672 = vadd.f32 %v321, %v671
        %v673 = vpop.f32.mrb[0].mxu0
        %v674 = vadd.f32 %v321, %v673
        %675 = vmatprep.mubr.bf16.mxu0 %v412
        %676 = vmatmul.mubr.bf16.gmra.mrb[0].mxu0 %v411
        %v677 = vpop.f32.mrb[0].mxu0
        %v678 = vadd.f32 %v326, %v677
        %v679 = vpop.f32.mrb[0].mxu0
        %v680 = vadd.f32 %v326, %v679
        %v681 = vpop.f32.mrb[0].mxu0
        %v682 = vadd.f32 %v331, %v681
        %v683 = vpop.f32.mrb[0].mxu0
        %v684 = vadd.f32 %v331, %v683
        %685 = vmatprep.mubr.bf16.mxu0 %v414
        %686 = vmatmul.mubr.bf16.gmra.mrb[0].mxu0 %v413
        %v687 = vpop.f32.mrb[0].mxu0
        %v688 = vadd.f32 %v336, %v687
        %v689 = vpop.f32.mrb[0].mxu0
        %v690 = vadd.f32 %v336, %v689
        %v691 = vpop.f32.mrb[0].mxu0
        %v692 = vadd.f32 %v341, %v691
        %v693 = vpop.f32.mrb[0].mxu0
        %v694 = vadd.f32 %v341, %v693
        %695 = vmatprep.mubr.bf16.mxu0 %v416
        %696 = vmatmul.mubr.bf16.gmra.mrb[0].mxu0 %v415
        %v697 = vpop.f32.mrb[0].mxu0
        %v698 = vadd.f32 %v346, %v697
        %v699 = vpop.f32.mrb[0].mxu0
        %v700 = vadd.f32 %v346, %v699
        %v701 = vpop.f32.mrb[0].mxu0
        %v702 = vadd.f32 %v351, %v701
        %v703 = vpop.f32.mrb[0].mxu0
        %v704 = vadd.f32 %v351, %v703
        %705 = vdwg.mxu0
        %706 = vst [vmem:[%s206] sm:$0xff] %v628
        %707 = vst [vmem:[%s206 + $0x8] sm:$0xff] %v630
        %708 = vst [vmem:[%s206 + $0x10] sm:$0xff] %v632
        %709 = vst [vmem:[%s206 + $0x18] sm:$0xff] %v634
        %710 = vst [vmem:[%s206 + $0x20] sm:$0xff] %v638
        %711 = vst [vmem:[%s206 + $0x28] sm:$0xff] %v640
        %712 = vst [vmem:[%s206 + $0x30] sm:$0xff] %v642
        %713 = vst [vmem:[%s206 + $0x38] sm:$0xff] %v644
        %714 = vst [vmem:[%s206 + $0x40] sm:$0xff] %v648
        %715 = vst [vmem:[%s206 + $0x48] sm:$0xff] %v650
        %716 = vst [vmem:[%s206 + $0x50] sm:$0xff] %v652
        %717 = vst [vmem:[%s206 + $0x58] sm:$0xff] %v654
        %718 = vst [vmem:[%s206 + $0x60] sm:$0xff] %v658
        %719 = vst [vmem:[%s206 + $0x68] sm:$0xff] %v660
        %720 = vst [vmem:[%s206 + $0x70] sm:$0xff] %v662
        %721 = vst [vmem:[%s206 + $0x78] sm:$0xff] %v664
        %722 = vst [vmem:[%s206 + $0x80] sm:$0xff] %v668
        %723 = vst [vmem:[%s206 + $0x88] sm:$0xff] %v670
        %724 = vst [vmem:[%s206 + $0x90] sm:$0xff] %v672
        %725 = vst [vmem:[%s206 + $0x98] sm:$0xff] %v674
        %726 = vst [vmem:[%s206 + $0xa0] sm:$0xff] %v678
        %727 = vst [vmem:[%s206 + $0xa8] sm:$0xff] %v680
        %728 = vst [vmem:[%s206 + $0xb0] sm:$0xff] %v682
        %729 = vst [vmem:[%s206 + $0xb8] sm:$0xff] %v684
        %730 = vst [vmem:[%s206 + $0xc0] sm:$0xff] %v688
        %731 = vst [vmem:[%s206 + $0xc8] sm:$0xff] %v690
        %732 = vst [vmem:[%s206 + $0xd0] sm:$0xff] %v692
        %733 = vst [vmem:[%s206 + $0xd8] sm:$0xff] %v694
        %734 = vst [vmem:[%s206 + $0xe0] sm:$0xff] %v698
        %735 = vst [vmem:[%s206 + $0xe8] sm:$0xff] %v700
        %736 = vst [vmem:[%s206 + $0xf0] sm:$0xff] %v702
        %737 = vst [vmem:[%s206 + $0xf8] sm:$0xff] %v704
        %s738 = sand.u32 %s112, 1
        %s739 = scalar_lea.sflag [#allocation4], %s738
        %s740 = sand.u32 %s112, 1
        %s741 = smul.addr %s740, 256
        %s742 = scalar_lea.vmem [#allocation5], %s741
        // Predicated region
        $region37: #{tpu_custom_call.1} parent=31 // pred_check
          %p743 = pneg %p122
        $region38: #{tpu_custom_call.1} parent=31 // pred_check_branch
          %745 = sbr.rel (%p743) target = $region40
        $region39: #{tpu_custom_call.1} parent=31 // pred_region
          %s746 = smul.u32 2, %s24
          %s748 = ssub.s32 4096, 4096
          %749 = vsyncadd %s739, %s748
          %s750 = smul.addr %s25, 32
          %s751 = sadd.s32 %s746, %s750
          %s752 = smul.addr %s751, 128
          %s753 = scalar_lea.hbm %s3, %s752
          %s754 = sshll.u32 %s742, 4
          %s755 = int_to_ptr.vmem [resolvable:$true] %s754
          %760 = dma.vmem_to_hbm [thread:$0]  %s755, 4096, %s753, %s739, 256, 256, 16
        $region40: #{tpu_custom_call.1} parent=31 // pred_fallthru
          _
      $region32: #{tpu_custom_call.1} parent=5 // pred_fallthru
        _
      %p761 = scmp.le.s32.totalorder 2, %s15
      // Predicated region
      $region41: #{tpu_custom_call.1} parent=5 // pred_check
        %p762 = pneg %p761
      $region42: #{tpu_custom_call.1} parent=5 // pred_check_branch
        %764 = sbr.rel (%p762) target = $region44
      $region43: #{tpu_custom_call.1} parent=5 // pred_region
        %s765 = ssub.s32 %s15, 2
        // Predicated region
        $region45: #{tpu_custom_call.1} parent=43 // pred_check
          %p766 = pneg %p128
        $region46: #{tpu_custom_call.1} parent=43 // pred_check_branch
          %768 = sbr.rel (%p766) target = $region48
        $region47: #{tpu_custom_call.1} parent=43 // pred_region
          %s769 = sand.u32 %s113, 1
          %s770 = scalar_lea.sflag [#allocation4], %s769
          %s771 = sand.u32 %s113, 1
          %s772 = smul.addr %s771, 256
          %s773 = scalar_lea.vmem [#allocation5], %s772
          %774 = dma.done %s770, 4096
        $region48: #{tpu_custom_call.1} parent=43 // pred_fallthru
          _
      $region44: #{tpu_custom_call.1} parent=5 // pred_fallthru
        _
    $region6: #{tpu_custom_call.1} parent=1 // loop_footer
      %s19 = sadd.s32 1, %s15
    $region7: #{tpu_custom_call.1} parent=1 // loop_footer_branch
      %14 = sbr.rel target = $region3
    $region8: #{tpu_custom_call.1} parent=1 // loop_exit
      _
    %775 = vsyncpa [#allocation3], 1
    %s776 = scalar_lea.sflag [#allocation3], 1
    %777 = vsyncpa %s776, 1
    %778 = vsyncpa [#allocation4], 1
    %s779 = scalar_lea.sflag [#allocation4], 1
    %780 = vsyncpa %s779, 1

</llo_original>
